<compile_context>
chip_gen: v5e
topology: v5e:2x2
jax: 0.10.0
libtpu: 0.0.40
codegen_flags: <defaults>
</compile_context>

<pallas_src>
import functools

import jax
import jax.numpy as jnp
from jax.experimental import pallas as pl
from jax.experimental.pallas import tpu as pltpu

LN_EPS = 1e-5
INV_SQRT2 = 0.7071067811865476


def _round_up(x: int, n: int) -> int:
    return ((x + n - 1) // n) * n


def _projection_kernel(x_ref, w1_ref, w2_ref, ln_ref, o_ref, *, d_out: int):
    # x_ref:  (tm, d_in)
    # w1_ref: (d_in, d_out_p)    (torch W1 transposed, padded on the lane axis)
    # w2_ref: (d_out_p, d_out_p) (torch W2 transposed, zero-padded rows/cols)
    # ln_ref: (2, d_out_p)       row 0 = gamma (f32), row 1 = beta (f32), zero-padded
    # o_ref:  (tm, d_out_p)
    #
    # Padded feature columns (>= d_out) of embed1/embed2/h are exactly zero because the
    # padded weight columns are zero, so only the variance needs an explicit mask.

    # linear1 (no bias) — native-dtype operands, f32 accumulation on the MXU.
    embed1 = jnp.dot(x_ref[...], w1_ref[...], preferred_element_type=jnp.float32)

    # exact (erf-based) GELU, matching F.gelu default.  (tanh approx would route to
    # the EUP slot if strict parity were not required.)
    gelu1 = 0.5 * embed1 * (1.0 + jax.lax.erf(embed1 * INV_SQRT2))

    # linear2 (no bias) — cast activations to the weight dtype (no-op for f32).
    embed2 = jnp.dot(gelu1.astype(w2_ref.dtype), w2_ref[...],
                     preferred_element_type=jnp.float32)
    # TODO(synk): training-mode dropout (p=0.5) would use pltpu.prng_seed +
    # pltpu.prng_random_bits to build a keep-mask here; eval mode is identity.

    h = embed1 + embed2  # (tm, d_out_p), padded cols are zero

    # LayerNorm over the real d_out features only.
    inv_d = 1.0 / float(d_out)
    mean = jnp.sum(h, axis=-1, keepdims=True) * inv_d  # padded cols contribute 0
    centered = h - mean
    if h.shape[-1] != d_out:  # static branch: mask padded columns out of the variance
        lane = jax.lax.broadcasted_iota(jnp.int32, h.shape, dimension=1)
        centered = jnp.where(lane < d_out, centered, 0.0)
    var = jnp.sum(centered * centered, axis=-1, keepdims=True) * inv_d
    normed = centered * jax.lax.rsqrt(var + LN_EPS)

    ln = ln_ref[...]                     # (2, d_out_p), already f32
    out = normed * ln[0:1, :] + ln[1:2, :]
    o_ref[...] = out.astype(o_ref.dtype)


@functools.partial(jax.jit, static_argnames=("tm",))
def projection_forward(x, w1_t, w2_t, gamma, beta, *, tm=256):
    """x: (..., d_in) -> (..., d_out).  w1_t: (d_in, d_out), w2_t: (d_out, d_out)."""
    orig_shape = x.shape
    d_in = orig_shape[-1]
    d_out = w1_t.shape[1]

    x2d = x.reshape(-1, d_in)
    m = x2d.shape[0]

    # ---- row (M) padding: no divisibility assert; clamp the tile for tiny inputs ----
    m_pad8 = _round_up(max(m, 1), 8)
    tm_eff = _round_up(min(tm, m_pad8), 8)
    m_pad = _round_up(m_pad8, tm_eff)
    if m_pad != m:
        x2d = jnp.pad(x2d, ((0, m_pad - m), (0, 0)))

    # ---- feature (d_out) padding to a lane-dense multiple of 128 ----
    d_out_p = _round_up(d_out, 128)
    pad_c = d_out_p - d_out
    w1_p = jnp.pad(w1_t, ((0, 0), (0, pad_c))) if pad_c else w1_t
    w2_p = jnp.pad(w2_t, ((0, pad_c), (0, pad_c))) if pad_c else w2_t

    # gamma/beta pre-cast to f32 in the wrapper, folded into a single (2, d_out_p) block
    ln = jnp.stack([gamma.astype(jnp.float32), beta.astype(jnp.float32)], axis=0)
    if pad_c:
        ln = jnp.pad(ln, ((0, 0), (0, pad_c)))

    kernel = functools.partial(_projection_kernel, d_out=d_out)

    out = pl.pallas_call(
        kernel,
        out_shape=jax.ShapeDtypeStruct((m_pad, d_out_p), x.dtype),
        grid_spec=pltpu.PrefetchScalarGridSpec(
            num_scalar_prefetch=0,
            grid=(m_pad // tm_eff,),
            in_specs=[
                pl.BlockSpec((tm_eff, d_in), lambda i: (i, 0)),        # x rows
                pl.BlockSpec((d_in, d_out_p), lambda i: (0, 0)),       # W1^T (resident)
                pl.BlockSpec((d_out_p, d_out_p), lambda i: (0, 0)),    # W2^T (resident)
                pl.BlockSpec((2, d_out_p), lambda i: (0, 0)),          # gamma/beta
            ],
            out_specs=pl.BlockSpec((tm_eff, d_out_p), lambda i: (i, 0)),
        ),
        compiler_params=pltpu.CompilerParams(
            dimension_semantics=("parallel",),      # megacore / v7x 2-TC row split
            vmem_limit_bytes=64 * 1024 * 1024,      # above 16/32 MiB scoped default
        ),
    )(x2d, w1_p, w2_p, ln)

    out = out[:m, :d_out]
    return out.reshape(*orig_shape[:-1], d_out)


def init_projection_params(key, d_in, d_out, dtype=jnp.float32):
    """Deterministic init mimicking nn.Linear default (uniform(-1/sqrt(fan_in), ...))."""
    k1, k2 = jax.random.split(key)
    bound1 = 1.0 / jnp.sqrt(d_in)
    bound2 = 1.0 / jnp.sqrt(d_out)
    # Stored already transposed: (d_in, d_out) and (d_out, d_out).
    w1_t = jax.random.uniform(k1, (d_in, d_out), dtype, minval=-bound1, maxval=bound1)
    w2_t = jax.random.uniform(k2, (d_out, d_out), dtype, minval=-bound2, maxval=bound2)
    gamma = jnp.ones((d_out,), dtype)
    beta = jnp.zeros((d_out,), dtype)
    return w1_t, w2_t, gamma, beta


def _reference_forward(x, w1_t, w2_t, gamma, beta):
    x32 = x.astype(jnp.float32)
    e1 = x32 @ w1_t.astype(jnp.float32)
    g = 0.5 * e1 * (1.0 + jax.lax.erf(e1 * INV_SQRT2))
    e2 = g @ w2_t.astype(jnp.float32)
    h = e1 + e2
    mean = jnp.mean(h, axis=-1, keepdims=True)
    var = jnp.mean((h - mean) ** 2, axis=-1, keepdims=True)
    out = (h - mean) * jax.lax.rsqrt(var + LN_EPS) * gamma + beta
    return out.astype(x.dtype)


if __name__ == "__main__":
    batch, seq, d_in, d_out = 2, 8, 32, 64

    key = jax.random.PRNGKey(0)
    kx, kp = jax.random.split(key)
    x = jax.random.normal(kx, (batch, seq, d_in), dtype=jnp.float32)
    w1_t, w2_t, gamma, beta = init_projection_params(kp, d_in, d_out)

    out = projection_forward(x, w1_t, w2_t, gamma, beta)
    out = jax.block_until_ready(out)

    ref = _reference_forward(x, w1_t, w2_t, gamma, beta)
    assert out.shape == (batch, seq, d_out)
    assert jnp.allclose(out, ref, atol=1e-4, rtol=1e-4), float(jnp.max(jnp.abs(out - ref)))

    print("KERNEL_OK")
</pallas_src>

<mosaic_0001>
module attributes {stable_mosaic.version = 11 : i64} {
  func.func @_projection_kernel(%arg0: i32, %arg1: memref<16x32xf32, #tpu.memory_space<vmem>>, %arg2: memref<32x128xf32, #tpu.memory_space<vmem>>, %arg3: memref<128x128xf32, #tpu.memory_space<vmem>>, %arg4: memref<2x128xf32, #tpu.memory_space<vmem>>, %arg5: memref<16x128xf32, #tpu.memory_space<vmem>>) attributes {dimension_semantics = [#tpu.dimension_semantics<parallel>], iteration_bounds = array<i64: 1>, scalar_prefetch = 0 : i64, scratch_operands = 0 : i64, tpu.core_type = #tpu.core_type<tc>, window_params = [{transform_indices = @transform_0, window_bounds = array<i64: 16, 32>}, {pipeline_mode = #tpu.pipeline_mode<synchronous>, transform_indices = @transform_1, window_bounds = array<i64: 32, 128>}, {pipeline_mode = #tpu.pipeline_mode<synchronous>, transform_indices = @transform_2, window_bounds = array<i64: 128, 128>}, {pipeline_mode = #tpu.pipeline_mode<synchronous>, transform_indices = @transform_3, window_bounds = array<i64: 2, 128>}, {transform_indices = @transform_4, window_bounds = array<i64: 16, 128>}]} {
    %c0 = arith.constant 0 : index
    %c0_0 = arith.constant 0 : index
    %0 = vector.load %arg1[%c0, %c0_0] : memref<16x32xf32, #tpu.memory_space<vmem>>, vector<16x32xf32>
    %c0_1 = arith.constant 0 : index
    %c0_2 = arith.constant 0 : index
    %1 = vector.load %arg2[%c0_1, %c0_2] : memref<32x128xf32, #tpu.memory_space<vmem>>, vector<32x128xf32>
    %cst = arith.constant dense<0.000000e+00> : vector<16x128xf32>
    %2 = tpu.matmul %0, %1, %cst {dimension_numbers = #tpu.dot_dimension_numbers<[1], [0], [0], [1], [0, 0, 1, 1], [], []>} : vector<16x32xf32>, vector<32x128xf32>, vector<16x128xf32> -> vector<16x128xf32>
    %cst_3 = arith.constant 5.000000e-01 : f32
    %3 = vector.broadcast %cst_3 : f32 to vector<16x128xf32>
    %4 = arith.mulf %3, %2 : vector<16x128xf32>
    %cst_4 = arith.constant 0.707106769 : f32
    %5 = vector.broadcast %cst_4 : f32 to vector<16x128xf32>
    %6 = arith.mulf %2, %5 : vector<16x128xf32>
    %7 = math.erf %6 : vector<16x128xf32>
    %cst_5 = arith.constant 1.000000e+00 : f32
    %8 = vector.broadcast %cst_5 : f32 to vector<16x128xf32>
    %9 = arith.addf %8, %7 : vector<16x128xf32>
    %10 = arith.mulf %4, %9 : vector<16x128xf32>
    %c0_6 = arith.constant 0 : index
    %c0_7 = arith.constant 0 : index
    %11 = vector.load %arg3[%c0_6, %c0_7] : memref<128x128xf32, #tpu.memory_space<vmem>>, vector<128x128xf32>
    %cst_8 = arith.constant dense<0.000000e+00> : vector<16x128xf32>
    %12 = tpu.matmul %10, %11, %cst_8 {dimension_numbers = #tpu.dot_dimension_numbers<[1], [0], [0], [1], [0, 0, 1, 1], [], []>} : vector<16x128xf32>, vector<128x128xf32>, vector<16x128xf32> -> vector<16x128xf32>
    %13 = arith.addf %2, %12 : vector<16x128xf32>
    %cst_9 = arith.constant dense<0.000000e+00> : vector<16xf32>
    %14 = vector.multi_reduction <add>, %13, %cst_9 [1] : vector<16x128xf32> to vector<16xf32>
    %15 = vector.shape_cast %14 : vector<16xf32> to vector<16x1xf32>
    %cst_10 = arith.constant 1.562500e-02 : f32
    %16 = vector.broadcast %cst_10 : f32 to vector<16x1xf32>
    %17 = arith.mulf %15, %16 : vector<16x1xf32>
    %18 = vector.broadcast %17 : vector<16x1xf32> to vector<16x128xf32>
    %19 = arith.subf %13, %18 : vector<16x128xf32>
    %20 = tpu.iota {dimensions = array<i32: 1>} : vector<16x128xi32>
    %c64_i32 = arith.constant 64 : i32
    %21 = vector.broadcast %c64_i32 : i32 to vector<16x128xi32>
    %22 = arith.cmpi slt, %20, %21 : vector<16x128xi32>
    %cst_11 = arith.constant 0.000000e+00 : f32
    %23 = vector.broadcast %cst_11 : f32 to vector<16x128xf32>
    %24 = arith.select %22, %19, %23 : vector<16x128xi1>, vector<16x128xf32>
    %25 = arith.mulf %24, %24 : vector<16x128xf32>
    %cst_12 = arith.constant dense<0.000000e+00> : vector<16xf32>
    %26 = vector.multi_reduction <add>, %25, %cst_12 [1] : vector<16x128xf32> to vector<16xf32>
    %27 = vector.shape_cast %26 : vector<16xf32> to vector<16x1xf32>
    %cst_13 = arith.constant 1.562500e-02 : f32
    %28 = vector.broadcast %cst_13 : f32 to vector<16x1xf32>
    %29 = arith.mulf %27, %28 : vector<16x1xf32>
    %cst_14 = arith.constant 9.99999974E-6 : f32
    %30 = vector.broadcast %cst_14 : f32 to vector<16x1xf32>
    %31 = arith.addf %29, %30 : vector<16x1xf32>
    %32 = math.rsqrt %31 : vector<16x1xf32>
    %33 = vector.broadcast %32 : vector<16x1xf32> to vector<16x128xf32>
    %34 = arith.mulf %24, %33 : vector<16x128xf32>
    %c0_15 = arith.constant 0 : index
    %c0_16 = arith.constant 0 : index
    %35 = vector.load %arg4[%c0_15, %c0_16] : memref<2x128xf32, #tpu.memory_space<vmem>>, vector<2x128xf32>
    %36 = vector.extract_strided_slice %35 {offsets = [0, 0], sizes = [1, 128], strides = [1, 1]} : vector<2x128xf32> to vector<1x128xf32>
    %37 = vector.broadcast %36 : vector<1x128xf32> to vector<16x128xf32>
    %38 = arith.mulf %34, %37 : vector<16x128xf32>
    %39 = vector.extract_strided_slice %35 {offsets = [1, 0], sizes = [1, 128], strides = [1, 1]} : vector<2x128xf32> to vector<1x128xf32>
    %40 = vector.broadcast %39 : vector<1x128xf32> to vector<16x128xf32>
    %41 = arith.addf %38, %40 : vector<16x128xf32>
    %c0_17 = arith.constant 0 : index
    %c0_18 = arith.constant 0 : index
    %42 = vector.load %arg5[%c0_17, %c0_18] : memref<16x128xf32, #tpu.memory_space<vmem>>, vector<16x128xf32>
    tpu.vector_store %arg5[%c0_17, %c0_18], %41 {strides = array<i32>} : memref<16x128xf32, #tpu.memory_space<vmem>>, vector<16x128xf32>,
    return
  }
  func.func @transform_0(%arg0: i32) -> (i32, i32) {
    %c0_i32 = arith.constant 0 : i32
    %c0_i32_0 = arith.constant 0 : i32
    return %arg0, %c0_i32 : i32, i32
  }
  func.func @transform_1(%arg0: i32) -> (i32, i32) {
    %c0_i32 = arith.constant 0 : i32
    %c0_i32_0 = arith.constant 0 : i32
    %c0_i32_1 = arith.constant 0 : i32
    return %c0_i32, %c0_i32_0 : i32, i32
  }
  func.func @transform_2(%arg0: i32) -> (i32, i32) {
    %c0_i32 = arith.constant 0 : i32
    %c0_i32_0 = arith.constant 0 : i32
    %c0_i32_1 = arith.constant 0 : i32
    return %c0_i32, %c0_i32_0 : i32, i32
  }
  func.func @transform_3(%arg0: i32) -> (i32, i32) {
    %c0_i32 = arith.constant 0 : i32
    %c0_i32_0 = arith.constant 0 : i32
    %c0_i32_1 = arith.constant 0 : i32
    return %c0_i32, %c0_i32_0 : i32, i32
  }
  func.func @transform_4(%arg0: i32) -> (i32, i32) {
    %c0_i32 = arith.constant 0 : i32
    %c0_i32_0 = arith.constant 0 : i32
    return %arg0, %c0_i32 : i32, i32
  }
}

</mosaic_0001>

<llo_original>
// kernel: projection_forward.1
$region0: #{projection_forward.1}
  #allocation0 [shape = 'u32[]', space=smem, size = 0x4, offset = 0x4, fixed_abs, tag = 'smem constant byte address 0x4 - core index']
  #allocation1 [shape = 'u32[72,128]{1,0:T(1,128)}', space=vmem, size = 0x9000, scoped, tag = 'internal scratch']
  %s0 = inlined_call_operand.vmem [shape: f32[16,32], index: 0, kind: input, shape index: {}]
  %s1 = inlined_call_operand.vmem [shape: f32[32,128], index: 1, kind: input, shape index: {}]
  %s2 = inlined_call_operand.vmem [shape: f32[128,128], index: 2, kind: input, shape index: {}]
  %s3 = inlined_call_operand.vmem [shape: f32[2,128], index: 3, kind: input, shape index: {}]
  %s4 = inlined_call_operand.vmem [shape: f32[16,128], index: 4, kind: output, shape index: {}]
  %s5 = sld [smem:[#allocation0]]
  $region26: #{projection_forward.1} parent=0
    _
  %s7 = ssub.s32 1, %s5
  %s8 = scalar_select 0, %s7, %s5
  // Predicated region
  $region2: #{projection_forward.1} parent=0 // pred_check
    _
  $region3: #{projection_forward.1} parent=0 // pred_check_branch
    %10 = sbr.rel (0) target = $region5
  $region4: #{projection_forward.1} parent=0 // pred_region
    _
  $region5: #{projection_forward.1} parent=0 // pred_fallthru
    _
  // Predicated region
  $region6: #{projection_forward.1} parent=0 // pred_check
    _
  $region7: #{projection_forward.1} parent=0 // pred_check_branch
    %12 = sbr.rel (0) target = $region9
  $region8: #{projection_forward.1} parent=0 // pred_region
    _
  $region9: #{projection_forward.1} parent=0 // pred_fallthru
    _
  // Predicated region
  $region10: #{projection_forward.1} parent=0 // pred_check
    _
  $region11: #{projection_forward.1} parent=0 // pred_check_branch
    %14 = sbr.rel (0) target = $region13
  $region12: #{projection_forward.1} parent=0 // pred_region
    _
  $region13: #{projection_forward.1} parent=0 // pred_fallthru
    _
  // Predicated region
  $region14: #{projection_forward.1} parent=0 // pred_check
    _
  $region15: #{projection_forward.1} parent=0 // pred_check_branch
    %16 = sbr.rel (0) target = $region17
  $region16: #{projection_forward.1} parent=0 // pred_region
    _
  $region17: #{projection_forward.1} parent=0 // pred_fallthru
    _
  %v17 = vld [vmem:[%s0] sm:$0xff]
  %v18 = vld [vmem:[%s0 + $0x8] sm:$0xff]
  %v19 = vld [vmem:[%s1] sm:$0xff]
  %v20 = vld [vmem:[%s1 + $0x8] sm:$0xff]
  %v21 = vld [vmem:[%s1 + $0x10] sm:$0xff]
  %v22 = vld [vmem:[%s1 + $0x18] sm:$0xff]
  %vm23 = vcmask 261120
  %v25 = vsel %vm23, %v17, 0
  %v28 = vsel %vm23, %v18, 0
  %30 = vmatpush.msra.mxu0 0.0
  %31 = vmatpush.msra.mxu0 0.0
  %32 = vmatpush.msra.mxu0 0.0
  %33 = vmatpush.msra.mxu0 0.0
  %34 = vmatpush.msra.mxu0 0.0
  %35 = vmatpush.msra.mxu0 0.0
  %36 = vmatpush.msra.mxu0 0.0
  %37 = vmatpush.msra.mxu0 0.0
  %38 = vmatpush.msra.mxu0 0.0
  %39 = vmatpush.msra.mxu0 0.0
  %40 = vmatpush.msra.mxu0 0.0
  %41 = vmatpush.msra.mxu0 0.0
  %42 = vmatpush.msra.mxu0 %v22
  %43 = vmatpush.msra.mxu0 %v21
  %44 = vmatpush.msra.mxu0 %v20
  %45 = vmatpush.msra.mxu0 %v19
  %46 = vmatmul.f32.gmra.mxu0 %v25
  %v47 = vpop.f32.mrf.mxu0
  %v48 = vadd.f32 0.0, %v47
  %49 = vmatmul.f32.gmra.mxu0 %v28
  %v50 = vpop.f32.mrf.mxu0
  %v51 = vadd.f32 0.0, %v50
  %52 = vdwg.mxu0
  %v53 = vmul.f32 %v48, 0.5
  %v54 = vmul.f32 %v51, 0.5
  %v55 = vmul.f32 %v48, 0.70710677
  %v56 = vmul.f32 %v51, 0.70710677
  %v57 = vmul.f32 %v55, %v55
  %v58 = vmin.f32 16.0, %v57
  %v59 = vmul.f32 %v58, 2.1237322e-06
  %v60 = vadd.f32 %v59, 0.00028619796
  %v61 = vmul.f32 %v58, %v60
  %v62 = vadd.f32 %v61, 0.0036580483
  %v63 = vmul.f32 %v58, %v62
  %v64 = vadd.f32 %v63, 0.05243302
  %v65 = vmul.f32 %v58, %v64
  %v66 = vadd.f32 %v65, 0.18741608
  %v67 = vmul.f32 %v58, %v66
  %v68 = vadd.f32 %v67, 1.1283791
  %v69 = vmul.f32 %v55, %v68
  %v70 = vmul.f32 %v58, 3.8918573e-05
  %v71 = vadd.f32 %v70, 0.001143296
  %v72 = vmul.f32 %v58, %v71
  %v73 = vadd.f32 %v72, 0.014752088
  %v74 = vmul.f32 %v58, %v73
  %v75 = vadd.f32 %v74, 0.112945676
  %v76 = vmul.f32 %v58, %v75
  %v77 = vadd.f32 %v76, 0.4994258
  %v78 = vmul.f32 %v58, %v77
  %v79 = vadd.f32 %v78, 1.0
  %v80 = vrcp.pop %v79
  %v81 = vmul.f32 %v79, %v80
  %v82 = vsub.f32 1.0, %v81
  %v83 = vmul.f32 %v80, %v82
  %v84 = vadd.f32 %v80, %v83
  %vm85 = vweird.f32 %v79
  %vm86 = vweird.f32 %v80
  %vm87 = vmor %vm85, %vm86
  %v88 = vsel %vm87, %v80, %v84
  %v89 = vand.u32 2147483647, %v79
  %vm90 = vcmp.eq.f32.partialorder %v89, 8.507059e+37
  %v91 = vand.u32 %v79, 2147483648
  %v92 = vor.u32 1.1754944e-38, %v91
  %v93 = vsel %vm90, %v92, %v88
  %v94 = vmul.f32 %v69, %v93
  %v95 = vmin.f32 %v94, 1.0
  %v96 = vmax.f32 %v95, -1.0
  %v97 = vmul.f32 %v56, %v56
  %v98 = vmin.f32 16.0, %v97
  %v99 = vmul.f32 %v98, 2.1237322e-06
  %v100 = vadd.f32 %v99, 0.00028619796
  %v101 = vmul.f32 %v98, %v100
  %v102 = vadd.f32 %v101, 0.0036580483
  %v103 = vmul.f32 %v98, %v102
  %v104 = vadd.f32 %v103, 0.05243302
  %v105 = vmul.f32 %v98, %v104
  %v106 = vadd.f32 %v105, 0.18741608
  %v107 = vmul.f32 %v98, %v106
  %v108 = vadd.f32 %v107, 1.1283791
  %v109 = vmul.f32 %v56, %v108
  %v110 = vmul.f32 %v98, 3.8918573e-05
  %v111 = vadd.f32 %v110, 0.001143296
  %v112 = vmul.f32 %v98, %v111
  %v113 = vadd.f32 %v112, 0.014752088
  %v114 = vmul.f32 %v98, %v113
  %v115 = vadd.f32 %v114, 0.112945676
  %v116 = vmul.f32 %v98, %v115
  %v117 = vadd.f32 %v116, 0.4994258
  %v118 = vmul.f32 %v98, %v117
  %v119 = vadd.f32 %v118, 1.0
  %v120 = vrcp.pop %v119
  %v121 = vmul.f32 %v119, %v120
  %v122 = vsub.f32 1.0, %v121
  %v123 = vmul.f32 %v120, %v122
  %v124 = vadd.f32 %v120, %v123
  %vm125 = vweird.f32 %v119
  %vm126 = vweird.f32 %v120
  %vm127 = vmor %vm125, %vm126
  %v128 = vsel %vm127, %v120, %v124
  %v129 = vand.u32 2147483647, %v119
  %vm130 = vcmp.eq.f32.partialorder %v129, 8.507059e+37
  %v131 = vand.u32 %v119, 2147483648
  %v132 = vor.u32 1.1754944e-38, %v131
  %v133 = vsel %vm130, %v132, %v128
  %v134 = vmul.f32 %v109, %v133
  %v135 = vmin.f32 %v134, 1.0
  %v136 = vmax.f32 %v135, -1.0
  %v137 = vadd.f32 %v96, 1.0
  %v138 = vadd.f32 %v136, 1.0
  %v139 = vmul.f32 %v53, %v137
  %v140 = vmul.f32 %v54, %v138
  %v141 = vld [vmem:[%s2] sm:$0xff]
  %v142 = vld [vmem:[%s2 + $0x8] sm:$0xff]
  %v143 = vld [vmem:[%s2 + $0x10] sm:$0xff]
  %v144 = vld [vmem:[%s2 + $0x18] sm:$0xff]
  %v145 = vld [vmem:[%s2 + $0x20] sm:$0xff]
  %v146 = vld [vmem:[%s2 + $0x28] sm:$0xff]
  %v147 = vld [vmem:[%s2 + $0x30] sm:$0xff]
  %v148 = vld [vmem:[%s2 + $0x38] sm:$0xff]
  %v149 = vld [vmem:[%s2 + $0x40] sm:$0xff]
  %v150 = vld [vmem:[%s2 + $0x48] sm:$0xff]
  %v151 = vld [vmem:[%s2 + $0x50] sm:$0xff]
  %v152 = vld [vmem:[%s2 + $0x58] sm:$0xff]
  %v153 = vld [vmem:[%s2 + $0x60] sm:$0xff]
  %v154 = vld [vmem:[%s2 + $0x68] sm:$0xff]
  %v155 = vld [vmem:[%s2 + $0x70] sm:$0xff]
  %v156 = vld [vmem:[%s2 + $0x78] sm:$0xff]
  %157 = vmatpush.msra.mxu0 %v156
  %158 = vmatpush.msra.mxu0 %v155
  %159 = vmatpush.msra.mxu0 %v154
  %160 = vmatpush.msra.mxu0 %v153
  %161 = vmatpush.msra.mxu0 %v152
  %162 = vmatpush.msra.mxu0 %v151
  %163 = vmatpush.msra.mxu0 %v150
  %164 = vmatpush.msra.mxu0 %v149
  %165 = vmatpush.msra.mxu0 %v148
  %166 = vmatpush.msra.mxu0 %v147
  %167 = vmatpush.msra.mxu0 %v146
  %168 = vmatpush.msra.mxu0 %v145
  %169 = vmatpush.msra.mxu0 %v144
  %170 = vmatpush.msra.mxu0 %v143
  %171 = vmatpush.msra.mxu0 %v142
  %172 = vmatpush.msra.mxu0 %v141
  %173 = vmatmul.f32.gmra.mxu0 %v139
  %v174 = vpop.f32.mrf.mxu0
  %v175 = vadd.f32 0.0, %v174
  %176 = vmatmul.f32.gmra.mxu0 %v140
  %v177 = vpop.f32.mrf.mxu0
  %v178 = vadd.f32 0.0, %v177
  %179 = vdwg.mxu0
  %v180 = vadd.f32 %v48, %v175
  %v181 = vadd.f32 %v51, %v178
  %182 = vadd.xlane.f32.xlu0 %v180
  %v183 = vpop.xlane.xlu0 %182
  %184 = vadd.xlane.f32.xlu0 %v181
  %v185 = vpop.xlane.xlu0 %184
  %v186 = vmul.f32 %v183, 0.015625
  %v187 = vmul.f32 %v185, 0.015625
  %v188 = vsub.f32 %v180, %v186
  %v189 = vsub.f32 %v181, %v187
  %v190 = vlaneseq
  %v191 = vand.u32 %v190, 127
  %vm192 = vcmp.lt.s32.totalorder %v191, 64
  %v193 = vsel %vm192, %v188, 0.0
  %v194 = vsel %vm192, %v189, 0.0
  %v195 = vmul.f32 %v193, %v193
  %v196 = vmul.f32 %v194, %v194
  %197 = vadd.xlane.f32.xlu0 %v195
  %v198 = vpop.xlane.xlu0 %197
  %199 = vadd.xlane.f32.xlu0 %v196
  %v200 = vpop.xlane.xlu0 %199
  %v201 = vmul.f32 %v198, 0.015625
  %v202 = vmul.f32 %v200, 0.015625
  %v203 = vadd.f32 %v201, 1e-05
  %v204 = vadd.f32 %v202, 1e-05
  %v205 = vrsqrt.pop %v203
  %v206 = vmul.f32 %v205, %v203
  %v207 = vmul.f32 %v206, %v205
  %v208 = vmul.f32 0.5, %v207
  %v209 = vsub.f32 1.5, %v208
  %v210 = vmul.f32 %v205, %v209
  %vm211 = vweird.f32 %v203
  %vm212 = vweird.f32 %v205
  %vm213 = vmor %vm211, %vm212
  %v214 = vsel %vm213, %v205, %v210
  %v215 = vrsqrt.pop %v204
  %v216 = vmul.f32 %v215, %v204
  %v217 = vmul.f32 %v216, %v215
  %v218 = vmul.f32 0.5, %v217
  %v219 = vsub.f32 1.5, %v218
  %v220 = vmul.f32 %v215, %v219
  %vm221 = vweird.f32 %v204
  %vm222 = vweird.f32 %v215
  %vm223 = vmor %vm221, %vm222
  %v224 = vsel %vm223, %v215, %v220
  %v225 = vmul.f32 %v193, %v214
  %v226 = vmul.f32 %v194, %v224
  %v227 = vld [vmem:[%s3] sm:$0x3]
  %v228 = vperm.slane %v227, 0
  %v229 = vmul.f32 %v225, %v228
  %v230 = vmul.f32 %v226, %v228
  %v231 = vperm.slane %v227, 1
  %v232 = vadd.f32 %v229, %v231
  %v233 = vadd.f32 %v230, %v231
  %234 = vst [vmem:[%s4] sm:$0xff] %v232
  %235 = vst [vmem:[%s4 + $0x8] sm:$0xff] %v233
  // Predicated region
  $region18: #{projection_forward.1} parent=0 // pred_check
    _
  $region19: #{projection_forward.1} parent=0 // pred_check_branch
    %237 = sbr.rel (0) target = $region21
  $region20: #{projection_forward.1} parent=0 // pred_region
    _
  $region21: #{projection_forward.1} parent=0 // pred_fallthru
    _
  // Predicated region
  $region22: #{projection_forward.1} parent=0 // pred_check
    _
  $region23: #{projection_forward.1} parent=0 // pred_check_branch
    %239 = sbr.rel (0) target = $region25
  $region24: #{projection_forward.1} parent=0 // pred_region
    _
  $region25: #{projection_forward.1} parent=0 // pred_fallthru
    _

</llo_original>
